<compile_context>
chip_gen: v6e
topology: v6e:2x2x1
jax: 0.10.0
libtpu: 0.0.40
codegen_flags: <defaults>
</compile_context>

<pallas_src>
import functools

import jax
import jax.numpy as jnp
from jax import lax
from jax.experimental import pallas as pl
from jax.experimental.pallas import tpu as pltpu


def additive_attention_kernel(valid_lens_ref,            # scalar-prefetch SMEM, (B_pad,) int32
                              q_ref, k_ref, v_ref,       # (BB*Q, Dq), (BB*K, Dk), (BB*K, Dv)
                              wqt_ref, wkt_ref, wv_ref,  # (Dq, H), (Dk, H), (1, H)
                              out_ref, attn_ref,         # (BB*Q, Dv), (BB*Q, K)
                              *, BB, Q, K):
    blk = pl.program_id(0)

    # Both projections as single MXU matmuls covering all BB batches in this block.
    qp = jnp.dot(q_ref[...], wqt_ref[...], preferred_element_type=jnp.float32)  # (BB*Q, H)
    kp = jnp.dot(k_ref[...], wkt_ref[...], preferred_element_type=jnp.float32)  # (BB*K, H)

    wv = wv_ref[...]                                            # (1, H)
    col = lax.broadcasted_iota(jnp.int32, (Q, K), 1)
    neg_big = jnp.float32(-1000000.0)

    # Static unroll over the (small, compile-time constant) batch block.
    for i in range(BB):
        qp_i = qp[i * Q:(i + 1) * Q, :]                         # (Q, H)
        kp_i = kp[i * K:(i + 1) * K, :]                         # (K, H)

        # features = tanh(q + k broadcast)  -> (Q, K, H)   (VPU add, EUP tanh)
        feats = jnp.tanh(qp_i[:, None, :] + kp_i[None, :, :])

        # score = <features, w_v> along H : VPU multiply + lane reduce (no N=1 MXU matvec)
        score = jnp.sum(feats * wv, axis=-1)                    # (Q, K)

        # masked softmax over the key axis (1-D valid_lens: one length per batch element)
        vl = valid_lens_ref[blk * BB + i]                       # scalar from SMEM
        score = jnp.where(col >= vl, neg_big, score)
        score = score - jnp.max(score, axis=-1, keepdims=True)
        p = jnp.exp(score)
        attn = p * pl.reciprocal(jnp.sum(p, axis=-1, keepdims=True), approx=True)

        v_i = v_ref[pl.ds(i * K, K), :]                         # (K, Dv)
        out_ref[pl.ds(i * Q, Q), :] = jnp.dot(attn, v_i,
                                              preferred_element_type=jnp.float32)
        attn_ref[pl.ds(i * Q, Q), :] = attn


def additive_attention(queries, keys, values, valid_lens, wq, wk, wv, *, block_b=8):
    """queries (B,Q,Dq), keys (B,K,Dk), values (B,K,Dv), valid_lens (B,) int,
    wq (H,Dq), wk (H,Dk), wv (1,H)  (PyTorch nn.Linear weight convention)."""
    B, Q, Dq = queries.shape
    _, K, Dk = keys.shape
    Dv = values.shape[-1]
    H = wq.shape[0]

    # Batch block size: all of B if small, else `block_b` (kept a multiple of 8 so the
    # flattened row-blocks satisfy the (8, 128) sublane divisibility rule).
    BB = B if B <= block_b else block_b
    B_pad = ((B + BB - 1) // BB) * BB
    valid_lens = valid_lens.astype(jnp.int32)
    if B_pad != B:
        pad = B_pad - B
        queries = jnp.pad(queries, ((0, pad), (0, 0), (0, 0)))
        keys = jnp.pad(keys, ((0, pad), (0, 0), (0, 0)))
        values = jnp.pad(values, ((0, pad), (0, 0), (0, 0)))
        valid_lens = jnp.pad(valid_lens, (0, pad), constant_values=K)

    # Flatten batch into row slabs (free in HBM) and pre-transpose weights once.
    q2 = queries.reshape(B_pad * Q, Dq)
    k2 = keys.reshape(B_pad * K, Dk)
    v2 = values.reshape(B_pad * K, Dv)
    wqt = wq.T                                                  # (Dq, H)
    wkt = wk.T                                                  # (Dk, H)

    kernel = functools.partial(additive_attention_kernel, BB=BB, Q=Q, K=K)

    out_shape = (
        jax.ShapeDtypeStruct((B_pad * Q, Dv), jnp.float32),     # bmm(attention, values)
        jax.ShapeDtypeStruct((B_pad * Q, K), jnp.float32),      # attention_weight
    )

    grid_spec = pltpu.PrefetchScalarGridSpec(
        num_scalar_prefetch=1,                 # valid_lens -> SMEM
        grid=(B_pad // BB,),
        in_specs=[
            pl.BlockSpec((BB * Q, Dq), lambda b, vl: (b, 0)),
            pl.BlockSpec((BB * K, Dk), lambda b, vl: (b, 0)),
            pl.BlockSpec((BB * K, Dv), lambda b, vl: (b, 0)),
            pl.BlockSpec((Dq, H), lambda b, vl: (0, 0)),        # resident weights
            pl.BlockSpec((Dk, H), lambda b, vl: (0, 0)),
            pl.BlockSpec((1, H), lambda b, vl: (0, 0)),
        ],
        out_specs=[
            pl.BlockSpec((BB * Q, Dv), lambda b, vl: (b, 0)),
            pl.BlockSpec((BB * Q, K), lambda b, vl: (b, 0)),
        ],
    )

    out2, attn2 = pl.pallas_call(
        kernel,
        out_shape=out_shape,
        grid_spec=grid_spec,
        compiler_params=pltpu.CompilerParams(dimension_semantics=("parallel",)),
    )(valid_lens, q2, k2, v2, wqt, wkt, wv)

    out = out2.reshape(B_pad, Q, Dv)[:B]
    attn = attn2.reshape(B_pad, Q, K)[:B]
    return out, attn


def additive_attention_ref(queries, keys, values, valid_lens, wq, wk, wv):
    """Plain-JAX reference mirroring the PyTorch module (eval mode)."""
    qp = queries @ wq.T                                         # (B, Q, H)
    kp = keys @ wk.T                                            # (B, K, H)
    feats = jnp.tanh(qp[:, :, None, :] + kp[:, None, :, :])
    score = jnp.einsum('bqkh,h->bqk', feats, wv[0])             # (B, Q, K)
    K = score.shape[-1]
    mask = jnp.arange(K)[None, None, :] >= valid_lens[:, None, None]
    score = jnp.where(mask, -1000000.0, score)
    attn = jax.nn.softmax(score, axis=-1)
    return jnp.einsum('bqk,bkd->bqd', attn, values), attn


if __name__ == "__main__":
    B, Q, K = 2, 4, 8
    query_size, key_size, num_hiddens, value_dim = 16, 16, 32, 16

    root = jax.random.PRNGKey(0)
    kq, kk, kv, kwq, kwk, kwv = jax.random.split(root, 6)

    queries = jax.random.normal(kq, (B, Q, query_size), dtype=jnp.float32)
    keys = jax.random.normal(kk, (B, K, key_size), dtype=jnp.float32)
    values = jax.random.normal(kv, (B, K, value_dim), dtype=jnp.float32)
    valid_lens = jnp.array([3, 6], dtype=jnp.int32)

    # deterministic parameter init (uniform, Linear-style scaling)
    wq = jax.random.uniform(kwq, (num_hiddens, query_size), jnp.float32,
                            -1.0 / query_size ** 0.5, 1.0 / query_size ** 0.5)
    wk = jax.random.uniform(kwk, (num_hiddens, key_size), jnp.float32,
                            -1.0 / key_size ** 0.5, 1.0 / key_size ** 0.5)
    wv = jax.random.uniform(kwv, (1, num_hiddens), jnp.float32,
                            -1.0 / num_hiddens ** 0.5, 1.0 / num_hiddens ** 0.5)

    out, attn = additive_attention(queries, keys, values, valid_lens, wq, wk, wv)
    jax.block_until_ready((out, attn))

    out_ref, attn_ref = additive_attention_ref(queries, keys, values, valid_lens, wq, wk, wv)
    # approx=True reciprocal in the softmax normalization -> relax tolerance slightly
    assert jnp.allclose(out, out_ref, atol=2e-3, rtol=2e-3)
    assert jnp.allclose(attn, attn_ref, atol=2e-3, rtol=2e-3)

    print("KERNEL_OK")
</pallas_src>

<mosaic_0001>
module attributes {stable_mosaic.version = 11 : i64} {
  func.func @additive_attention_kernel(%arg0: i32, %arg1: memref<2xi32, #tpu.memory_space<smem>>, %arg2: memref<8x16xf32, #tpu.memory_space<vmem>>, %arg3: memref<16x16xf32, #tpu.memory_space<vmem>>, %arg4: memref<16x16xf32, #tpu.memory_space<vmem>>, %arg5: memref<16x32xf32, #tpu.memory_space<vmem>>, %arg6: memref<16x32xf32, #tpu.memory_space<vmem>>, %arg7: memref<1x32xf32, #tpu.memory_space<vmem>>, %arg8: memref<8x16xf32, #tpu.memory_space<vmem>>, %arg9: memref<8x8xf32, #tpu.memory_space<vmem>>) attributes {dimension_semantics = [#tpu.dimension_semantics<parallel>], iteration_bounds = array<i64: 1>, scalar_prefetch = 1 : i64, scratch_operands = 0 : i64, tpu.core_type = #tpu.core_type<tc>, window_params = [{transform_indices = @transform_0, window_bounds = array<i64: 8, 16>}, {transform_indices = @transform_1, window_bounds = array<i64: 16, 16>}, {transform_indices = @transform_2, window_bounds = array<i64: 16, 16>}, {pipeline_mode = #tpu.pipeline_mode<synchronous>, transform_indices = @transform_3, window_bounds = array<i64: 16, 32>}, {pipeline_mode = #tpu.pipeline_mode<synchronous>, transform_indices = @transform_4, window_bounds = array<i64: 16, 32>}, {pipeline_mode = #tpu.pipeline_mode<synchronous>, transform_indices = @transform_5, window_bounds = array<i64: 1, 32>}, {transform_indices = @transform_6, window_bounds = array<i64: 8, 16>}, {transform_indices = @transform_7, window_bounds = array<i64: 8, 8>}]} {
    %c0 = arith.constant 0 : index
    %c0_0 = arith.constant 0 : index
    %0 = vector.load %arg2[%c0, %c0_0] : memref<8x16xf32, #tpu.memory_space<vmem>>, vector<8x16xf32>
    %c0_1 = arith.constant 0 : index
    %c0_2 = arith.constant 0 : index
    %1 = vector.load %arg5[%c0_1, %c0_2] : memref<16x32xf32, #tpu.memory_space<vmem>>, vector<16x32xf32>
    %cst = arith.constant dense<0.000000e+00> : vector<8x32xf32>
    %2 = tpu.matmul %0, %1, %cst {dimension_numbers = #tpu.dot_dimension_numbers<[1], [0], [0], [1], [0, 0, 1, 1], [], []>} : vector<8x16xf32>, vector<16x32xf32>, vector<8x32xf32> -> vector<8x32xf32>
    %c0_3 = arith.constant 0 : index
    %c0_4 = arith.constant 0 : index
    %3 = vector.load %arg3[%c0_3, %c0_4] : memref<16x16xf32, #tpu.memory_space<vmem>>, vector<16x16xf32>
    %c0_5 = arith.constant 0 : index
    %c0_6 = arith.constant 0 : index
    %4 = vector.load %arg6[%c0_5, %c0_6] : memref<16x32xf32, #tpu.memory_space<vmem>>, vector<16x32xf32>
    %cst_7 = arith.constant dense<0.000000e+00> : vector<16x32xf32>
    %5 = tpu.matmul %3, %4, %cst_7 {dimension_numbers = #tpu.dot_dimension_numbers<[1], [0], [0], [1], [0, 0, 1, 1], [], []>} : vector<16x16xf32>, vector<16x32xf32>, vector<16x32xf32> -> vector<16x32xf32>
    %c0_8 = arith.constant 0 : index
    %c0_9 = arith.constant 0 : index
    %6 = vector.load %arg7[%c0_8, %c0_9] : memref<1x32xf32, #tpu.memory_space<vmem>>, vector<1x32xf32>
    %7 = tpu.iota {dimensions = array<i32: 1>} : vector<4x8xi32>
    %8 = vector.extract_strided_slice %2 {offsets = [0, 0], sizes = [4, 32], strides = [1, 1]} : vector<8x32xf32> to vector<4x32xf32>
    %9 = vector.extract_strided_slice %5 {offsets = [0, 0], sizes = [8, 32], strides = [1, 1]} : vector<16x32xf32> to vector<8x32xf32>
    %10 = vector.shape_cast %8 : vector<4x32xf32> to vector<4x1x32xf32>
    %11 = vector.shape_cast %9 : vector<8x32xf32> to vector<1x8x32xf32>
    %12 = vector.broadcast %10 : vector<4x1x32xf32> to vector<4x8x32xf32>
    %13 = vector.broadcast %11 : vector<1x8x32xf32> to vector<4x8x32xf32>
    %14 = arith.addf %12, %13 : vector<4x8x32xf32>
    %15 = math.tanh %14 : vector<4x8x32xf32>
    %16 = vector.shape_cast %6 : vector<1x32xf32> to vector<1x1x32xf32>
    %17 = vector.broadcast %16 : vector<1x1x32xf32> to vector<4x8x32xf32>
    %18 = arith.mulf %15, %17 : vector<4x8x32xf32>
    %cst_10 = arith.constant dense<0.000000e+00> : vector<4x8xf32>
    %19 = vector.multi_reduction <add>, %18, %cst_10 [2] : vector<4x8x32xf32> to vector<4x8xf32>
    %c2_i32 = arith.constant 2 : i32
    %20 = arith.muli %arg0, %c2_i32 : i32
    %c0_i32 = arith.constant 0 : i32
    %21 = arith.addi %20, %c0_i32 : i32
    %22 = arith.index_cast %21 : i32 to index
    %23 = memref.load %arg1[%22] : memref<2xi32, #tpu.memory_space<smem>>
    %24 = vector.broadcast %23 : i32 to vector<4x8xi32>
    %25 = arith.cmpi sge, %7, %24 : vector<4x8xi32>
    %cst_11 = arith.constant -1.000000e+06 : f32
    %26 = vector.broadcast %cst_11 : f32 to vector<4x8xf32>
    %27 = arith.select %25, %26, %19 : vector<4x8xi1>, vector<4x8xf32>
    %cst_12 = arith.constant dense<0xFF800000> : vector<4xf32>
    %28 = vector.multi_reduction <maximumf>, %27, %cst_12 [1] : vector<4x8xf32> to vector<4xf32>
    %29 = vector.shape_cast %28 : vector<4xf32> to vector<4x1xf32>
    %30 = vector.broadcast %29 : vector<4x1xf32> to vector<4x8xf32>
    %31 = arith.subf %27, %30 : vector<4x8xf32>
    %32 = math.exp %31 : vector<4x8xf32>
    %cst_13 = arith.constant dense<0.000000e+00> : vector<4xf32>
    %33 = vector.multi_reduction <add>, %32, %cst_13 [1] : vector<4x8xf32> to vector<4xf32>
    %34 = vector.shape_cast %33 : vector<4xf32> to vector<4x1xf32>
    %35 = tpu.reciprocal %34 {approx = true} : vector<4x1xf32> -> vector<4x1xf32>
    %36 = vector.broadcast %35 : vector<4x1xf32> to vector<4x8xf32>
    %37 = arith.mulf %32, %36 : vector<4x8xf32>
    %c0_14 = arith.constant 0 : index
    %c0_15 = arith.constant 0 : index
    %38 = vector.load %arg4[%c0_14, %c0_15] : memref<16x16xf32, #tpu.memory_space<vmem>>, vector<8x16xf32>
    %cst_16 = arith.constant dense<0.000000e+00> : vector<4x16xf32>
    %39 = tpu.matmul %37, %38, %cst_16 {dimension_numbers = #tpu.dot_dimension_numbers<[1], [0], [0], [1], [0, 0, 1, 1], [], []>} : vector<4x8xf32>, vector<8x16xf32>, vector<4x16xf32> -> vector<4x16xf32>
    %c0_17 = arith.constant 0 : index
    %c0_18 = arith.constant 0 : index
    %40 = vector.load %arg8[%c0_17, %c0_18] : memref<8x16xf32, #tpu.memory_space<vmem>>, vector<4x16xf32>
    tpu.vector_store %arg8[%c0_17, %c0_18], %39 {strides = array<i32>} : memref<8x16xf32, #tpu.memory_space<vmem>>, vector<4x16xf32>,
    %c0_19 = arith.constant 0 : index
    %c0_20 = arith.constant 0 : index
    %41 = vector.load %arg9[%c0_19, %c0_20] : memref<8x8xf32, #tpu.memory_space<vmem>>, vector<4x8xf32>
    tpu.vector_store %arg9[%c0_19, %c0_20], %37 {strides = array<i32>} : memref<8x8xf32, #tpu.memory_space<vmem>>, vector<4x8xf32>,
    %42 = vector.extract_strided_slice %2 {offsets = [4, 0], sizes = [4, 32], strides = [1, 1]} : vector<8x32xf32> to vector<4x32xf32>
    %43 = vector.extract_strided_slice %5 {offsets = [8, 0], sizes = [8, 32], strides = [1, 1]} : vector<16x32xf32> to vector<8x32xf32>
    %44 = vector.shape_cast %42 : vector<4x32xf32> to vector<4x1x32xf32>
    %45 = vector.shape_cast %43 : vector<8x32xf32> to vector<1x8x32xf32>
    %46 = vector.broadcast %44 : vector<4x1x32xf32> to vector<4x8x32xf32>
    %47 = vector.broadcast %45 : vector<1x8x32xf32> to vector<4x8x32xf32>
    %48 = arith.addf %46, %47 : vector<4x8x32xf32>
    %49 = math.tanh %48 : vector<4x8x32xf32>
    %50 = vector.shape_cast %6 : vector<1x32xf32> to vector<1x1x32xf32>
    %51 = vector.broadcast %50 : vector<1x1x32xf32> to vector<4x8x32xf32>
    %52 = arith.mulf %49, %51 : vector<4x8x32xf32>
    %cst_21 = arith.constant dense<0.000000e+00> : vector<4x8xf32>
    %53 = vector.multi_reduction <add>, %52, %cst_21 [2] : vector<4x8x32xf32> to vector<4x8xf32>
    %c2_i32_22 = arith.constant 2 : i32
    %54 = arith.muli %arg0, %c2_i32_22 : i32
    %c1_i32 = arith.constant 1 : i32
    %55 = arith.addi %54, %c1_i32 : i32
    %56 = arith.index_cast %55 : i32 to index
    %57 = memref.load %arg1[%56] : memref<2xi32, #tpu.memory_space<smem>>
    %58 = vector.broadcast %57 : i32 to vector<4x8xi32>
    %59 = arith.cmpi sge, %7, %58 : vector<4x8xi32>
    %cst_23 = arith.constant -1.000000e+06 : f32
    %60 = vector.broadcast %cst_23 : f32 to vector<4x8xf32>
    %61 = arith.select %59, %60, %53 : vector<4x8xi1>, vector<4x8xf32>
    %cst_24 = arith.constant dense<0xFF800000> : vector<4xf32>
    %62 = vector.multi_reduction <maximumf>, %61, %cst_24 [1] : vector<4x8xf32> to vector<4xf32>
    %63 = vector.shape_cast %62 : vector<4xf32> to vector<4x1xf32>
    %64 = vector.broadcast %63 : vector<4x1xf32> to vector<4x8xf32>
    %65 = arith.subf %61, %64 : vector<4x8xf32>
    %66 = math.exp %65 : vector<4x8xf32>
    %cst_25 = arith.constant dense<0.000000e+00> : vector<4xf32>
    %67 = vector.multi_reduction <add>, %66, %cst_25 [1] : vector<4x8xf32> to vector<4xf32>
    %68 = vector.shape_cast %67 : vector<4xf32> to vector<4x1xf32>
    %69 = tpu.reciprocal %68 {approx = true} : vector<4x1xf32> -> vector<4x1xf32>
    %70 = vector.broadcast %69 : vector<4x1xf32> to vector<4x8xf32>
    %71 = arith.mulf %66, %70 : vector<4x8xf32>
    %c8 = arith.constant 8 : index
    %c0_26 = arith.constant 0 : index
    %72 = vector.load %arg4[%c8, %c0_26] : memref<16x16xf32, #tpu.memory_space<vmem>>, vector<8x16xf32>
    %cst_27 = arith.constant dense<0.000000e+00> : vector<4x16xf32>
    %73 = tpu.matmul %71, %72, %cst_27 {dimension_numbers = #tpu.dot_dimension_numbers<[1], [0], [0], [1], [0, 0, 1, 1], [], []>} : vector<4x8xf32>, vector<8x16xf32>, vector<4x16xf32> -> vector<4x16xf32>
    %c4 = arith.constant 4 : index
    %c0_28 = arith.constant 0 : index
    %74 = vector.load %arg8[%c4, %c0_28] : memref<8x16xf32, #tpu.memory_space<vmem>>, vector<4x16xf32>
    tpu.vector_store %arg8[%c4, %c0_28], %73 {strides = array<i32>} : memref<8x16xf32, #tpu.memory_space<vmem>>, vector<4x16xf32>,
    %c4_29 = arith.constant 4 : index
    %c0_30 = arith.constant 0 : index
    %75 = vector.load %arg9[%c4_29, %c0_30] : memref<8x8xf32, #tpu.memory_space<vmem>>, vector<4x8xf32>
    tpu.vector_store %arg9[%c4_29, %c0_30], %71 {strides = array<i32>} : memref<8x8xf32, #tpu.memory_space<vmem>>, vector<4x8xf32>,
    return
  }
  func.func @transform_0(%arg0: i32, %arg1: memref<2xi32, #tpu.memory_space<smem>>) -> (i32, i32) {
    %c0_i32 = arith.constant 0 : i32
    %c0_i32_0 = arith.constant 0 : i32
    return %arg0, %c0_i32 : i32, i32
  }
  func.func @transform_1(%arg0: i32, %arg1: memref<2xi32, #tpu.memory_space<smem>>) -> (i32, i32) {
    %c0_i32 = arith.constant 0 : i32
    %c0_i32_0 = arith.constant 0 : i32
    return %arg0, %c0_i32 : i32, i32
  }
  func.func @transform_2(%arg0: i32, %arg1: memref<2xi32, #tpu.memory_space<smem>>) -> (i32, i32) {
    %c0_i32 = arith.constant 0 : i32
    %c0_i32_0 = arith.constant 0 : i32
    return %arg0, %c0_i32 : i32, i32
  }
  func.func @transform_3(%arg0: i32, %arg1: memref<2xi32, #tpu.memory_space<smem>>) -> (i32, i32) {
    %c0_i32 = arith.constant 0 : i32
    %c0_i32_0 = arith.constant 0 : i32
    %c0_i32_1 = arith.constant 0 : i32
    return %c0_i32, %c0_i32_0 : i32, i32
  }
  func.func @transform_4(%arg0: i32, %arg1: memref<2xi32, #tpu.memory_space<smem>>) -> (i32, i32) {
    %c0_i32 = arith.constant 0 : i32
    %c0_i32_0 = arith.constant 0 : i32
    %c0_i32_1 = arith.constant 0 : i32
    return %c0_i32, %c0_i32_0 : i32, i32
  }
  func.func @transform_5(%arg0: i32, %arg1: memref<2xi32, #tpu.memory_space<smem>>) -> (i32, i32) {
    %c0_i32 = arith.constant 0 : i32
    %c0_i32_0 = arith.constant 0 : i32
    %c0_i32_1 = arith.constant 0 : i32
    return %c0_i32, %c0_i32_0 : i32, i32
  }
  func.func @transform_6(%arg0: i32, %arg1: memref<2xi32, #tpu.memory_space<smem>>) -> (i32, i32) {
    %c0_i32 = arith.constant 0 : i32
    %c0_i32_0 = arith.constant 0 : i32
    return %arg0, %c0_i32 : i32, i32
  }
  func.func @transform_7(%arg0: i32, %arg1: memref<2xi32, #tpu.memory_space<smem>>) -> (i32, i32) {
    %c0_i32 = arith.constant 0 : i32
    %c0_i32_0 = arith.constant 0 : i32
    return %arg0, %c0_i32 : i32, i32
  }
}

</mosaic_0001>

<llo_original>
// kernel: tpu_custom_call.1
$region0: #{tpu_custom_call.1}
  #allocation0 [shape = 'u32[]', space=smem, size = 0x4, offset = 0x4, fixed_abs, tag = 'smem constant byte address 0x4 - core index']
  #allocation1 [shape = 'u32[144,128]{1,0:T(1,128)}', space=vmem, size = 0x12000, scoped, tag = 'internal scratch']
  #allocation2 [shape = 's32[1]{0}', space=sflag, size = 0x4, scoped, tag = 'scoped memory for tpu_custom_call.1']
  #allocation3 [shape = 'u8[512]{0}', space=smem, size = 0x200, scoped, tag = 'prefetched SMEM operand 0']
  %s0 = inlined_call_operand.hbm [shape: s32[2], index: 0, kind: input, shape index: {}]
  %s1 = inlined_call_operand.hbm [shape: f32[8,16], index: 1, kind: input, shape index: {}]
  %s2 = inlined_call_operand.hbm [shape: f32[16,16], index: 2, kind: input, shape index: {}]
  %s3 = inlined_call_operand.hbm [shape: f32[16,16], index: 3, kind: input, shape index: {}]
  %s4 = inlined_call_operand.hbm [shape: f32[16,32], index: 4, kind: input, shape index: {}]
  %s5 = inlined_call_operand.hbm [shape: f32[16,32], index: 5, kind: input, shape index: {}]
  %s6 = inlined_call_operand.vmem [shape: f32[1,32], index: 6, kind: input, shape index: {}]
  %s7 = inlined_call_operand.hbm [shape: f32[8,16], index: 7, kind: output, shape index: {0}]
  %s8 = inlined_call_operand.hbm [shape: f32[8,8], index: 8, kind: output, shape index: {1}]
  %9 = xla_tuple %s7, %s8
  %s10 = sld [smem:[#allocation0]]
  $region62: #{tpu_custom_call.1} parent=0
    _
  %s12 = ssub.s32 1, %s10
  %s13 = scalar_select 0, %s12, %s10
  %15 = dma.hbm_to_smem %s0, 16, [#allocation3], [#allocation2]
  %16 = dma.done [#allocation2], 16
  %17 = sfence
  $region1: #{tpu_custom_call.1} parent=0
    #allocation4 [shape = 'u8[4096]{0}', space=vmem, size = 0x1000, scoped, tag = 'input window, operand 1, single buffered']
    #allocation5 [shape = 's32[1]{0}', space=sflag, size = 0x4, scoped, tag = 'scoped memory for tpu_custom_call.1']
    #allocation6 [shape = 's32[1]{0}', space=sflag, size = 0x4, scoped, tag = 'scoped memory for tpu_custom_call.1']
    #allocation7 [shape = 'u8[8192]{0}', space=vmem, size = 0x2000, scoped, tag = 'input window, operand 2, single buffered']
    #allocation8 [shape = 's32[1]{0}', space=sflag, size = 0x4, scoped, tag = 'scoped memory for tpu_custom_call.1']
    #allocation9 [shape = 'u8[8192]{0}', space=vmem, size = 0x2000, scoped, tag = 'input window, operand 3, single buffered']
    #allocation10 [shape = 'u8[8192]{0}', space=vmem, size = 0x2000, scoped, tag = 'input window, operand 4, single buffered']
    #allocation11 [shape = 's32[1]{0}', space=sflag, size = 0x4, scoped, tag = 'scoped memory for tpu_custom_call.1']
    #allocation12 [shape = 'u8[8192]{0}', space=vmem, size = 0x2000, scoped, tag = 'input window, operand 5, single buffered']
    #allocation13 [shape = 'u8[4096]{0}', space=vmem, size = 0x1000, scoped, tag = 'output window, operand 0, single buffered']
    #allocation14 [shape = 'u8[4096]{0}', space=vmem, size = 0x1000, scoped, tag = 'output window, operand 1, single buffered']
    #allocation15 [shape = 's32[1]{0}', space=sflag, size = 0x4, scoped, tag = 'scoped memory for tpu_custom_call.1']
    %18 = vsyncpa [#allocation5], 0
    %19 = vsyncpa [#allocation8], 0
    %20 = vsyncpa [#allocation11], 0
    %21 = vsyncpa [#allocation6], 0
    %22 = vsyncpa [#allocation15], 0
    // Predicated region
    $region2: #{tpu_custom_call.1} parent=1 // pred_check
      _
    $region3: #{tpu_custom_call.1} parent=1 // pred_check_branch
      %24 = sbr.rel (0) target = $region5
    $region4: #{tpu_custom_call.1} parent=1 // pred_region
      %s26 = ssub.s32 128, 128
      %27 = vsyncadd [#allocation5], %s26
      %s29 = sshll.u32 [#allocation4], 4
      %s30 = int_to_ptr.vmem [resolvable:$true] %s29
      %32 = dma.hbm_to_vmem [thread:$0]  %s1, 128, %s30, [#allocation5]
    $region5: #{tpu_custom_call.1} parent=1 // pred_fallthru
      _
    // Predicated region
    $region6: #{tpu_custom_call.1} parent=1 // pred_check
      _
    $region7: #{tpu_custom_call.1} parent=1 // pred_check_branch
      %34 = sbr.rel (0) target = $region9
    $region8: #{tpu_custom_call.1} parent=1 // pred_region
      %s36 = ssub.s32 256, 256
      %37 = vsyncadd [#allocation8], %s36
      %s38 = sshll.u32 [#allocation7], 4
      %s39 = int_to_ptr.vmem [resolvable:$true] %s38
      %44 = dma.hbm_to_vmem [thread:$0]  %s2, 256, %s39, [#allocation8], 128, 128, 8
    $region9: #{tpu_custom_call.1} parent=1 // pred_fallthru
      _
    // Predicated region
    $region10: #{tpu_custom_call.1} parent=1 // pred_check
      _
    $region11: #{tpu_custom_call.1} parent=1 // pred_check_branch
      %46 = sbr.rel (0) target = $region13
    $region12: #{tpu_custom_call.1} parent=1 // pred_region
      %s48 = ssub.s32 256, 256
      %49 = vsyncadd [#allocation8], %s48
      %s50 = sshll.u32 [#allocation9], 4
      %s51 = int_to_ptr.vmem [resolvable:$true] %s50
      %56 = dma.hbm_to_vmem [thread:$0]  %s3, 256, %s51, [#allocation8], 128, 128, 8
    $region13: #{tpu_custom_call.1} parent=1 // pred_fallthru
      _
    // Predicated region
    $region14: #{tpu_custom_call.1} parent=1 // pred_check
      _
    $region15: #{tpu_custom_call.1} parent=1 // pred_check_branch
      %58 = sbr.rel (0) target = $region17
    $region16: #{tpu_custom_call.1} parent=1 // pred_region
      %s60 = ssub.s32 256, 256
      %61 = vsyncadd [#allocation11], %s60
      %s62 = sshll.u32 [#allocation10], 4
      %s63 = int_to_ptr.vmem [resolvable:$true] %s62
      %68 = dma.hbm_to_vmem [thread:$0]  %s4, 256, %s63, [#allocation11], 128, 128, 8
    $region17: #{tpu_custom_call.1} parent=1 // pred_fallthru
      _
    // Predicated region
    $region18: #{tpu_custom_call.1} parent=1 // pred_check
      _
    $region19: #{tpu_custom_call.1} parent=1 // pred_check_branch
      %70 = sbr.rel (0) target = $region21
    $region20: #{tpu_custom_call.1} parent=1 // pred_region
      %s72 = ssub.s32 256, 256
      %73 = vsyncadd [#allocation11], %s72
      %s74 = sshll.u32 [#allocation12], 4
      %s75 = int_to_ptr.vmem [resolvable:$true] %s74
      %80 = dma.hbm_to_vmem [thread:$0]  %s5, 256, %s75, [#allocation11], 128, 128, 8
    $region21: #{tpu_custom_call.1} parent=1 // pred_fallthru
      _
    // Predicated region
    $region22: #{tpu_custom_call.1} parent=1 // pred_check
      _
    $region23: #{tpu_custom_call.1} parent=1 // pred_check_branch
      %82 = sbr.rel (0) target = $region25
    $region24: #{tpu_custom_call.1} parent=1 // pred_region
      _
    $region25: #{tpu_custom_call.1} parent=1 // pred_fallthru
      _
    // Predicated region
    $region26: #{tpu_custom_call.1} parent=1 // pred_check
      _
    $region27: #{tpu_custom_call.1} parent=1 // pred_check_branch
      %84 = sbr.rel (0) target = $region29
    $region28: #{tpu_custom_call.1} parent=1 // pred_region
      %85 = dma.done [#allocation5], 128
    $region29: #{tpu_custom_call.1} parent=1 // pred_fallthru
      _
    // Predicated region
    $region30: #{tpu_custom_call.1} parent=1 // pred_check
      _
    $region31: #{tpu_custom_call.1} parent=1 // pred_check_branch
      %87 = sbr.rel (0) target = $region33
    $region32: #{tpu_custom_call.1} parent=1 // pred_region
      %88 = dma.done [#allocation8], 256
    $region33: #{tpu_custom_call.1} parent=1 // pred_fallthru
      _
    // Predicated region
    $region34: #{tpu_custom_call.1} parent=1 // pred_check
      _
    $region35: #{tpu_custom_call.1} parent=1 // pred_check_branch
      %90 = sbr.rel (0) target = $region37
    $region36: #{tpu_custom_call.1} parent=1 // pred_region
      %91 = dma.done [#allocation8], 256
    $region37: #{tpu_custom_call.1} parent=1 // pred_fallthru
      _
    // Predicated region
    $region38: #{tpu_custom_call.1} parent=1 // pred_check
      _
    $region39: #{tpu_custom_call.1} parent=1 // pred_check_branch
      %93 = sbr.rel (0) target = $region41
    $region40: #{tpu_custom_call.1} parent=1 // pred_region
      %94 = dma.done [#allocation11], 256
    $region41: #{tpu_custom_call.1} parent=1 // pred_fallthru
      _
    // Predicated region
    $region42: #{tpu_custom_call.1} parent=1 // pred_check
      _
    $region43: #{tpu_custom_call.1} parent=1 // pred_check_branch
      %96 = sbr.rel (0) target = $region45
    $region44: #{tpu_custom_call.1} parent=1 // pred_region
      %97 = dma.done [#allocation11], 256
    $region45: #{tpu_custom_call.1} parent=1 // pred_fallthru
      _
    %v98 = vld [vmem:[#allocation4] sm:$0xff]
    %v99 = vld [vmem:[#allocation10] sm:$0xff]
    %v100 = vld [vmem:[#allocation10 + $0x8] sm:$0xff]
    %vm101 = vcmask 130048
    %v103 = vsel %vm101, %v98, 0
    %105 = vmatprep.subr.mxu0 0.0
    %106 = vmatpush1.msra.mxu0 0.0
    %107 = vmatprep.subr.mxu0 0.0
    %108 = vmatpush1.msra.mxu0 0.0
    %109 = vmatprep.subr.mxu0 0.0
    %110 = vmatpush1.msra.mxu0 0.0
    %111 = vmatprep.subr.mxu0 0.0
    %112 = vmatpush1.msra.mxu0 0.0
    %113 = vmatprep.subr.mxu0 0.0
    %114 = vmatpush1.msra.mxu0 0.0
    %115 = vmatprep.subr.mxu0 0.0
    %116 = vmatpush1.msra.mxu0 0.0
    %117 = vmatprep.subr.mxu0 0.0
    %118 = vmatpush1.msra.mxu0 0.0
    %119 = vmatprep.subr.mxu0 0.0
    %120 = vmatpush1.msra.mxu0 0.0
    %121 = vmatprep.subr.mxu0 0.0
    %122 = vmatpush1.msra.mxu0 0.0
    %123 = vmatprep.subr.mxu0 0.0
    %124 = vmatpush1.msra.mxu0 0.0
    %125 = vmatprep.subr.mxu0 0.0
    %126 = vmatpush1.msra.mxu0 0.0
    %127 = vmatprep.subr.mxu0 0.0
    %128 = vmatpush1.msra.mxu0 0.0
    %129 = vmatprep.subr.mxu0 0.0
    %130 = vmatpush1.msra.mxu0 0.0
    %131 = vmatprep.subr.mxu0 0.0
    %132 = vmatpush1.msra.mxu0 0.0
    %133 = vmatprep.subr.mxu0 0.0
    %134 = vmatpush1.msra.mxu0 %v100
    %135 = vmatprep.subr.mxu0 0.0
    %136 = vmatpush1.msra.mxu0 %v99
    %137 = vmatprep.subr.mxu0 0.0
    %138 = vmatpush2.msra.mxu0 0.0
    %139 = vmatprep.subr.mxu0 0.0
    %140 = vmatpush2.msra.mxu0 0.0
    %141 = vmatprep.subr.mxu0 0.0
    %142 = vmatpush2.msra.mxu0 0.0
    %143 = vmatprep.subr.mxu0 0.0
    %144 = vmatpush2.msra.mxu0 0.0
    %145 = vmatprep.subr.mxu0 0.0
    %146 = vmatpush2.msra.mxu0 0.0
    %147 = vmatprep.subr.mxu0 0.0
    %148 = vmatpush2.msra.mxu0 0.0
    %149 = vmatprep.subr.mxu0 0.0
    %150 = vmatpush2.msra.mxu0 0.0
    %151 = vmatprep.subr.mxu0 0.0
    %152 = vmatpush2.msra.mxu0 0.0
    %153 = vmatprep.subr.mxu0 0.0
    %154 = vmatpush2.msra.mxu0 0.0
    %155 = vmatprep.subr.mxu0 0.0
    %156 = vmatpush2.msra.mxu0 0.0
    %157 = vmatprep.subr.mxu0 0.0
    %158 = vmatpush2.msra.mxu0 0.0
    %159 = vmatprep.subr.mxu0 0.0
    %160 = vmatpush2.msra.mxu0 0.0
    %161 = vmatprep.subr.mxu0 0.0
    %162 = vmatpush2.msra.mxu0 0.0
    %163 = vmatprep.subr.mxu0 0.0
    %164 = vmatpush2.msra.mxu0 0.0
    %165 = vmatprep.subr.mxu0 0.0
    %166 = vmatpush2.msra.mxu0 0.0
    %167 = vmatprep.subr.mxu0 0.0
    %168 = vmatpush2.msra.mxu0 0.0
    %169 = vmatprep.mubr.f32.mxu0 0.0
    %170 = vmatmul.mubr.f32.gmra.mxu0 %v103
    %v171 = vpop.f32.mrf.mxu0
    %v172 = vadd.f32 0.0, %v171
    %v173 = vpop.f32.mrf.mxu0
    %174 = vdwg.mxu0
    %v175 = vld [vmem:[#allocation7] sm:$0xff]
    %v176 = vld [vmem:[#allocation7 + $0x8] sm:$0xff]
    %v177 = vld [vmem:[#allocation12] sm:$0xff]
    %v178 = vld [vmem:[#allocation12 + $0x8] sm:$0xff]
    %v180 = vsel %vm101, %v175, 0
    %v183 = vsel %vm101, %v176, 0
    %185 = vmatprep.subr.mxu0 0.0
    %186 = vmatpush1.msra.mxu0 0.0
    %187 = vmatprep.subr.mxu0 0.0
    %188 = vmatpush1.msra.mxu0 0.0
    %189 = vmatprep.subr.mxu0 0.0
    %190 = vmatpush1.msra.mxu0 0.0
    %191 = vmatprep.subr.mxu0 0.0
    %192 = vmatpush1.msra.mxu0 0.0
    %193 = vmatprep.subr.mxu0 0.0
    %194 = vmatpush1.msra.mxu0 0.0
    %195 = vmatprep.subr.mxu0 0.0
    %196 = vmatpush1.msra.mxu0 0.0
    %197 = vmatprep.subr.mxu0 0.0
    %198 = vmatpush1.msra.mxu0 0.0
    %199 = vmatprep.subr.mxu0 0.0
    %200 = vmatpush1.msra.mxu0 0.0
    %201 = vmatprep.subr.mxu0 0.0
    %202 = vmatpush1.msra.mxu0 0.0
    %203 = vmatprep.subr.mxu0 0.0
    %204 = vmatpush1.msra.mxu0 0.0
    %205 = vmatprep.subr.mxu0 0.0
    %206 = vmatpush1.msra.mxu0 0.0
    %207 = vmatprep.subr.mxu0 0.0
    %208 = vmatpush1.msra.mxu0 0.0
    %209 = vmatprep.subr.mxu0 0.0
    %210 = vmatpush1.msra.mxu0 0.0
    %211 = vmatprep.subr.mxu0 0.0
    %212 = vmatpush1.msra.mxu0 0.0
    %213 = vmatprep.subr.mxu0 0.0
    %214 = vmatpush1.msra.mxu0 %v178
    %215 = vmatprep.subr.mxu0 0.0
    %216 = vmatpush1.msra.mxu0 %v177
    %217 = vmatprep.subr.mxu0 0.0
    %218 = vmatpush2.msra.mxu0 0.0
    %219 = vmatprep.subr.mxu0 0.0
    %220 = vmatpush2.msra.mxu0 0.0
    %221 = vmatprep.subr.mxu0 0.0
    %222 = vmatpush2.msra.mxu0 0.0
    %223 = vmatprep.subr.mxu0 0.0
    %224 = vmatpush2.msra.mxu0 0.0
    %225 = vmatprep.subr.mxu0 0.0
    %226 = vmatpush2.msra.mxu0 0.0
    %227 = vmatprep.subr.mxu0 0.0
    %228 = vmatpush2.msra.mxu0 0.0
    %229 = vmatprep.subr.mxu0 0.0
    %230 = vmatpush2.msra.mxu0 0.0
    %231 = vmatprep.subr.mxu0 0.0
    %232 = vmatpush2.msra.mxu0 0.0
    %233 = vmatprep.subr.mxu0 0.0
    %234 = vmatpush2.msra.mxu0 0.0
    %235 = vmatprep.subr.mxu0 0.0
    %236 = vmatpush2.msra.mxu0 0.0
    %237 = vmatprep.subr.mxu0 0.0
    %238 = vmatpush2.msra.mxu0 0.0
    %239 = vmatprep.subr.mxu0 0.0
    %240 = vmatpush2.msra.mxu0 0.0
    %241 = vmatprep.subr.mxu0 0.0
    %242 = vmatpush2.msra.mxu0 0.0
    %243 = vmatprep.subr.mxu0 0.0
    %244 = vmatpush2.msra.mxu0 0.0
    %245 = vmatprep.subr.mxu0 0.0
    %246 = vmatpush2.msra.mxu0 0.0
    %247 = vmatprep.subr.mxu0 0.0
    %248 = vmatpush2.msra.mxu0 0.0
    %249 = vmatprep.mubr.f32.mxu0 0.0
    %250 = vmatmul.mubr.f32.gmra.mxu0 %v180
    %v251 = vpop.f32.mrf.mxu0
    %v252 = vadd.f32 0.0, %v251
    %v253 = vpop.f32.mrf.mxu0
    %254 = vmatprep.mubr.f32.mxu0 0.0
    %255 = vmatmul.mubr.f32.gmra.mxu0 %v183
    %v256 = vpop.f32.mrf.mxu0
    %v257 = vadd.f32 0.0, %v256
    %v258 = vpop.f32.mrf.mxu0
    %259 = vdwg.mxu0
    %v260 = vld [vmem:[%s6] sm:$0x1]
    %v261 = vlaneseq
    %v262 = vand.u32 %v261, 127
    %v265 = vunpack.c.l.s4 1966171168
    %v266 = vunpack.c.0.s8 %v265
    %v267 = vlaneseq
    %v268 = vshrl.u32 %v267, 7
    %v269 = vsub.s32 %v266, %v268
    %v270 = vrot.slane %v172, %v269
    %v271 = vcombine.high %v270, %v270
    %v273 = vunpack.c.l.s4 1966171168
    %v274 = vunpack.c.0.s8 %v273
    %v275 = vlaneseq
    %v276 = vshrl.u32 %v275, 7
    %v277 = vsub.s32 %v274, %v276
    %v278 = vrot.slane %v270, %v277
    %v280 = vunpack.c.l.s4 1966171168
    %v281 = vunpack.c.0.s8 %v280
    %v282 = vlaneseq
    %v283 = vshrl.u32 %v282, 7
    %v284 = vsub.s32 %v281, %v283
    %v285 = vrot.slane %v271, %v284
    %v286 = vcombine.high %v278, %v278
    %v287 = vcombine.high %v285, %v285
    %v288 = vlaneseq
    %v289 = vshrl.u32 %v288, 7
    %v290 = vsub.s32 0, %v289
    %v291 = vrot.slane %v278, %v290
    %v292 = vlaneseq
    %v293 = vshrl.u32 %v292, 7
    %v294 = vsub.s32 0, %v293
    %v295 = vrot.slane %v285, %v294
    %v296 = vlaneseq
    %v297 = vshrl.u32 %v296, 7
    %v298 = vsub.s32 0, %v297
    %v299 = vrot.slane %v286, %v298
    %v300 = vlaneseq
    %v301 = vshrl.u32 %v300, 7
    %v302 = vsub.s32 0, %v301
    %v303 = vrot.slane %v287, %v302
    %v308 = vadd.f32 %v291, %v252
    %v309 = vadd.f32 %v295, %v252
    %v310 = vadd.f32 %v299, %v252
    %v311 = vadd.f32 %v303, %v252
    %v312 = vtanh.pop %v308
    %v313 = vtanh.pop %v309
    %v314 = vtanh.pop %v310
    %v315 = vtanh.pop %v311
    %v317 = vlaneseq
    %v318 = vshrl.u32 %v317, 7
    %v319 = vsub.s32 0, %v318
    %v320 = vrot.slane %v260, %v319
    %v322 = vmul.f32 %v312, %v320
    %v323 = vmul.f32 %v313, %v320
    %v324 = vmul.f32 %v314, %v320
    %v325 = vmul.f32 %v315, %v320
    %vm326 = vcmask 261120
    %v327 = vsel %vm326, %v322, 0.0
    %328 = vadd.xlane.f32.xlu0 %v327
    %v329 = vpop.xlane.xlu0 %328
    %v330 = vsel %vm326, %v323, 0.0
    %331 = vadd.xlane.f32.xlu0 %v330
    %v332 = vpop.xlane.xlu0 %331
    %v333 = vsel %vm326, %v324, 0.0
    %334 = vadd.xlane.f32.xlu0 %v333
    %v335 = vpop.xlane.xlu0 %334
    %v336 = vsel %vm326, %v325, 0.0
    %337 = vadd.xlane.f32.xlu0 %v336
    %v338 = vpop.xlane.xlu0 %337
    %s339 = smul.u32 0, 2
    %s340 = sld [smem:[#allocation3 + %s339]]
    %v341 = vstv %s340
    %vm342 = vcmp.ge.s32.totalorder %v262, %v341
    %v347 = vlaneseq
    %v348 = vshrl.u32 %v347, 7
    %v349 = vsub.s32 %v262, %v348
    %v350 = vrot.slane %v329, %v349
    %v351 = vlaneseq
    %v352 = vshrl.u32 %v351, 7
    %v353 = vsub.s32 %v262, %v352
    %v354 = vrot.slane %v332, %v353
    %v355 = vlaneseq
    %v356 = vshrl.u32 %v355, 7
    %v357 = vsub.s32 %v262, %v356
    %v358 = vrot.slane %v335, %v357
    %v359 = vlaneseq
    %v360 = vshrl.u32 %v359, 7
    %v361 = vsub.s32 %v262, %v360
    %v362 = vrot.slane %v338, %v361
    %vm363 = vcmask 1041409
    %v364 = vsel %vm363, %v354, %v350
    %vm365 = vcmask 1042434
    %v366 = vsel %vm365, %v358, %v364
    %vm367 = vcmask 1043459
    %v368 = vsel %vm367, %v362, %v366
    %v370 = vsel %vm342, -1000000.0, %v368
    %vm371 = vcmask 60416
    %v372 = vsel %vm371, %v370, -inf
    %373 = vmax.xlane.f32.xlu0 %v372
    %v374 = vpop.xlane.xlu0 %373
    %v375 = vsub.f32 %v370, %v374
    %v376 = vmul.f32 %v375, 1.442695
    %v377 = vpow.pop %v376
    %v378 = vsel %vm371, %v377, 0.0
    %379 = vadd.xlane.f32.xlu0 %v378
    %v380 = vpop.xlane.xlu0 %379
    %v381 = vrcp.pop %v380
    %v382 = vmul.f32 %v377, %v381
    %v383 = vld [vmem:[#allocation9] sm:$0xff]
    %vm384 = vcmask 64512
    %v386 = vsel %vm384, %v382, 0
    %388 = vmatprep.subr.mxu0 0.0
    %389 = vmatpush1.msra.mxu0 0.0
    %390 = vmatprep.subr.mxu0 0.0
    %391 = vmatpush1.msra.mxu0 0.0
    %392 = vmatprep.subr.mxu0 0.0
    %393 = vmatpush1.msra.mxu0 0.0
    %394 = vmatprep.subr.mxu0 0.0
    %395 = vmatpush1.msra.mxu0 0.0
    %396 = vmatprep.subr.mxu0 0.0
    %397 = vmatpush1.msra.mxu0 0.0
    %398 = vmatprep.subr.mxu0 0.0
    %399 = vmatpush1.msra.mxu0 0.0
    %400 = vmatprep.subr.mxu0 0.0
    %401 = vmatpush1.msra.mxu0 0.0
    %402 = vmatprep.subr.mxu0 0.0
    %403 = vmatpush1.msra.mxu0 0.0
    %404 = vmatprep.subr.mxu0 0.0
    %405 = vmatpush1.msra.mxu0 0.0
    %406 = vmatprep.subr.mxu0 0.0
    %407 = vmatpush1.msra.mxu0 0.0
    %408 = vmatprep.subr.mxu0 0.0
    %409 = vmatpush1.msra.mxu0 0.0
    %410 = vmatprep.subr.mxu0 0.0
    %411 = vmatpush1.msra.mxu0 0.0
    %412 = vmatprep.subr.mxu0 0.0
    %413 = vmatpush1.msra.mxu0 0.0
    %414 = vmatprep.subr.mxu0 0.0
    %415 = vmatpush1.msra.mxu0 0.0
    %416 = vmatprep.subr.mxu0 0.0
    %417 = vmatpush1.msra.mxu0 0.0
    %418 = vmatprep.subr.mxu0 0.0
    %419 = vmatpush1.msra.mxu0 %v383
    %420 = vmatprep.subr.mxu0 0.0
    %421 = vmatpush2.msra.mxu0 0.0
    %422 = vmatprep.subr.mxu0 0.0
    %423 = vmatpush2.msra.mxu0 0.0
    %424 = vmatprep.subr.mxu0 0.0
    %425 = vmatpush2.msra.mxu0 0.0
    %426 = vmatprep.subr.mxu0 0.0
    %427 = vmatpush2.msra.mxu0 0.0
    %428 = vmatprep.subr.mxu0 0.0
    %429 = vmatpush2.msra.mxu0 0.0
    %430 = vmatprep.subr.mxu0 0.0
    %431 = vmatpush2.msra.mxu0 0.0
    %432 = vmatprep.subr.mxu0 0.0
    %433 = vmatpush2.msra.mxu0 0.0
    %434 = vmatprep.subr.mxu0 0.0
    %435 = vmatpush2.msra.mxu0 0.0
    %436 = vmatprep.subr.mxu0 0.0
    %437 = vmatpush2.msra.mxu0 0.0
    %438 = vmatprep.subr.mxu0 0.0
    %439 = vmatpush2.msra.mxu0 0.0
    %440 = vmatprep.subr.mxu0 0.0
    %441 = vmatpush2.msra.mxu0 0.0
    %442 = vmatprep.subr.mxu0 0.0
    %443 = vmatpush2.msra.mxu0 0.0
    %444 = vmatprep.subr.mxu0 0.0
    %445 = vmatpush2.msra.mxu0 0.0
    %446 = vmatprep.subr.mxu0 0.0
    %447 = vmatpush2.msra.mxu0 0.0
    %448 = vmatprep.subr.mxu0 0.0
    %449 = vmatpush2.msra.mxu0 0.0
    %450 = vmatprep.subr.mxu0 0.0
    %451 = vmatpush2.msra.mxu0 0.0
    %452 = vmatprep.mubr.f32.mxu0 0.0
    %453 = vmatmul.mubr.f32.gmra.mxu0 %v386
    %v454 = vpop.f32.mrf.mxu0
    %v455 = vadd.f32 0.0, %v454
    %v456 = vpop.f32.mrf.mxu0
    %457 = vdwg.mxu0
    %vm458 = vcmask 125952
    %459 = vst.msk [vmem:[#allocation13] sm:$0xf] %vm458, %v455
    %460 = vst.msk [vmem:[#allocation14] sm:$0xf] %vm371, %v382
    %v461 = vcombine.high %v172, %v172
    %v463 = vunpack.c.l.s4 1966171168
    %v464 = vunpack.c.0.s8 %v463
    %v465 = vlaneseq
    %v466 = vshrl.u32 %v465, 7
    %v467 = vsub.s32 %v464, %v466
    %v468 = vrot.slane %v461, %v467
    %v469 = vcombine.high %v468, %v468
    %v471 = vunpack.c.l.s4 1966171168
    %v472 = vunpack.c.0.s8 %v471
    %v473 = vlaneseq
    %v474 = vshrl.u32 %v473, 7
    %v475 = vsub.s32 %v472, %v474
    %v476 = vrot.slane %v468, %v475
    %v478 = vunpack.c.l.s4 1966171168
    %v479 = vunpack.c.0.s8 %v478
    %v480 = vlaneseq
    %v481 = vshrl.u32 %v480, 7
    %v482 = vsub.s32 %v479, %v481
    %v483 = vrot.slane %v469, %v482
    %v484 = vcombine.high %v476, %v476
    %v485 = vcombine.high %v483, %v483
    %v486 = vlaneseq
    %v487 = vshrl.u32 %v486, 7
    %v488 = vsub.s32 0, %v487
    %v489 = vrot.slane %v476, %v488
    %v490 = vlaneseq
    %v491 = vshrl.u32 %v490, 7
    %v492 = vsub.s32 0, %v491
    %v493 = vrot.slane %v483, %v492
    %v494 = vlaneseq
    %v495 = vshrl.u32 %v494, 7
    %v496 = vsub.s32 0, %v495
    %v497 = vrot.slane %v484, %v496
    %v498 = vlaneseq
    %v499 = vshrl.u32 %v498, 7
    %v500 = vsub.s32 0, %v499
    %v501 = vrot.slane %v485, %v500
    %v506 = vadd.f32 %v489, %v257
    %v507 = vadd.f32 %v493, %v257
    %v508 = vadd.f32 %v497, %v257
    %v509 = vadd.f32 %v501, %v257
    %v510 = vtanh.pop %v506
    %v511 = vtanh.pop %v507
    %v512 = vtanh.pop %v508
    %v513 = vtanh.pop %v509
    %v514 = vmul.f32 %v510, %v320
    %v515 = vmul.f32 %v511, %v320
    %v516 = vmul.f32 %v512, %v320
    %v517 = vmul.f32 %v513, %v320
    %v518 = vsel %vm326, %v514, 0.0
    %519 = vadd.xlane.f32.xlu0 %v518
    %v520 = vpop.xlane.xlu0 %519
    %v521 = vsel %vm326, %v515, 0.0
    %522 = vadd.xlane.f32.xlu0 %v521
    %v523 = vpop.xlane.xlu0 %522
    %v524 = vsel %vm326, %v516, 0.0
    %525 = vadd.xlane.f32.xlu0 %v524
    %v526 = vpop.xlane.xlu0 %525
    %v527 = vsel %vm326, %v517, 0.0
    %528 = vadd.xlane.f32.xlu0 %v527
    %v529 = vpop.xlane.xlu0 %528
    %s530 = sadd.s32 %s339, 1
    %s531 = sld [smem:[#allocation3 + %s530]]
    %v532 = vstv %s531
    %vm533 = vcmp.ge.s32.totalorder %v262, %v532
    %v538 = vlaneseq
    %v539 = vshrl.u32 %v538, 7
    %v540 = vsub.s32 %v262, %v539
    %v541 = vrot.slane %v520, %v540
    %v542 = vlaneseq
    %v543 = vshrl.u32 %v542, 7
    %v544 = vsub.s32 %v262, %v543
    %v545 = vrot.slane %v523, %v544
    %v546 = vlaneseq
    %v547 = vshrl.u32 %v546, 7
    %v548 = vsub.s32 %v262, %v547
    %v549 = vrot.slane %v526, %v548
    %v550 = vlaneseq
    %v551 = vshrl.u32 %v550, 7
    %v552 = vsub.s32 %v262, %v551
    %v553 = vrot.slane %v529, %v552
    %v554 = vsel %vm363, %v545, %v541
    %v555 = vsel %vm365, %v549, %v554
    %v556 = vsel %vm367, %v553, %v555
    %v558 = vsel %vm533, -1000000.0, %v556
    %v559 = vsel %vm371, %v558, -inf
    %560 = vmax.xlane.f32.xlu0 %v559
    %v561 = vpop.xlane.xlu0 %560
    %v562 = vsub.f32 %v558, %v561
    %v563 = vmul.f32 %v562, 1.442695
    %v564 = vpow.pop %v563
    %v565 = vsel %vm371, %v564, 0.0
    %566 = vadd.xlane.f32.xlu0 %v565
    %v567 = vpop.xlane.xlu0 %566
    %v568 = vrcp.pop %v567
    %v569 = vmul.f32 %v564, %v568
    %v570 = vld [vmem:[#allocation9 + $0x8] sm:$0xff]
    %v572 = vsel %vm384, %v569, 0
    %574 = vmatprep.subr.mxu0 0.0
    %575 = vmatpush1.msra.mxu0 0.0
    %576 = vmatprep.subr.mxu0 0.0
    %577 = vmatpush1.msra.mxu0 0.0
    %578 = vmatprep.subr.mxu0 0.0
    %579 = vmatpush1.msra.mxu0 0.0
    %580 = vmatprep.subr.mxu0 0.0
    %581 = vmatpush1.msra.mxu0 0.0
    %582 = vmatprep.subr.mxu0 0.0
    %583 = vmatpush1.msra.mxu0 0.0
    %584 = vmatprep.subr.mxu0 0.0
    %585 = vmatpush1.msra.mxu0 0.0
    %586 = vmatprep.subr.mxu0 0.0
    %587 = vmatpush1.msra.mxu0 0.0
    %588 = vmatprep.subr.mxu0 0.0
    %589 = vmatpush1.msra.mxu0 0.0
    %590 = vmatprep.subr.mxu0 0.0
    %591 = vmatpush1.msra.mxu0 0.0
    %592 = vmatprep.subr.mxu0 0.0
    %593 = vmatpush1.msra.mxu0 0.0
    %594 = vmatprep.subr.mxu0 0.0
    %595 = vmatpush1.msra.mxu0 0.0
    %596 = vmatprep.subr.mxu0 0.0
    %597 = vmatpush1.msra.mxu0 0.0
    %598 = vmatprep.subr.mxu0 0.0
    %599 = vmatpush1.msra.mxu0 0.0
    %600 = vmatprep.subr.mxu0 0.0
    %601 = vmatpush1.msra.mxu0 0.0
    %602 = vmatprep.subr.mxu0 0.0
    %603 = vmatpush1.msra.mxu0 0.0
    %604 = vmatprep.subr.mxu0 0.0
    %605 = vmatpush1.msra.mxu0 %v570
    %606 = vmatprep.subr.mxu0 0.0
    %607 = vmatpush2.msra.mxu0 0.0
    %608 = vmatprep.subr.mxu0 0.0
    %609 = vmatpush2.msra.mxu0 0.0
    %610 = vmatprep.subr.mxu0 0.0
    %611 = vmatpush2.msra.mxu0 0.0
    %612 = vmatprep.subr.mxu0 0.0
    %613 = vmatpush2.msra.mxu0 0.0
    %614 = vmatprep.subr.mxu0 0.0
    %615 = vmatpush2.msra.mxu0 0.0
    %616 = vmatprep.subr.mxu0 0.0
    %617 = vmatpush2.msra.mxu0 0.0
    %618 = vmatprep.subr.mxu0 0.0
    %619 = vmatpush2.msra.mxu0 0.0
    %620 = vmatprep.subr.mxu0 0.0
    %621 = vmatpush2.msra.mxu0 0.0
    %622 = vmatprep.subr.mxu0 0.0
    %623 = vmatpush2.msra.mxu0 0.0
    %624 = vmatprep.subr.mxu0 0.0
    %625 = vmatpush2.msra.mxu0 0.0
    %626 = vmatprep.subr.mxu0 0.0
    %627 = vmatpush2.msra.mxu0 0.0
    %628 = vmatprep.subr.mxu0 0.0
    %629 = vmatpush2.msra.mxu0 0.0
    %630 = vmatprep.subr.mxu0 0.0
    %631 = vmatpush2.msra.mxu0 0.0
    %632 = vmatprep.subr.mxu0 0.0
    %633 = vmatpush2.msra.mxu0 0.0
    %634 = vmatprep.subr.mxu0 0.0
    %635 = vmatpush2.msra.mxu0 0.0
    %636 = vmatprep.subr.mxu0 0.0
    %637 = vmatpush2.msra.mxu0 0.0
    %638 = vmatprep.mubr.f32.mxu0 0.0
    %639 = vmatmul.mubr.f32.gmra.mxu0 %v572
    %v640 = vpop.f32.mrf.mxu0
    %v641 = vadd.f32 0.0, %v640
    %v642 = vpop.f32.mrf.mxu0
    %643 = vdwg.mxu0
    %644 = vst.msk [vmem:[#allocation13 + $0x4] sm:$0xf] %vm458, %v641
    %645 = vst.msk [vmem:[#allocation14 + $0x4] sm:$0xf] %vm371, %v569
    // Predicated region
    $region46: #{tpu_custom_call.1} parent=1 // pred_check
      _
    $region47: #{tpu_custom_call.1} parent=1 // pred_check_branch
      %647 = sbr.rel (0) target = $region49
    $region48: #{tpu_custom_call.1} parent=1 // pred_region
      %s649 = ssub.s32 128, 128
      %650 = vsyncadd [#allocation6], %s649
      %s652 = sshll.u32 [#allocation13], 4
      %s653 = int_to_ptr.vmem [resolvable:$true] %s652
      %655 = dma.vmem_to_hbm [thread:$0]  %s653, 128, %s7, [#allocation6]
    $region49: #{tpu_custom_call.1} parent=1 // pred_fallthru
      _
    // Predicated region
    $region50: #{tpu_custom_call.1} parent=1 // pred_check
      _
    $region51: #{tpu_custom_call.1} parent=1 // pred_check_branch
      %657 = sbr.rel (0) target = $region53
    $region52: #{tpu_custom_call.1} parent=1 // pred_region
      %s659 = ssub.s32 128, 128
      %660 = vsyncadd [#allocation15], %s659
      %s662 = sshll.u32 [#allocation14], 4
      %s663 = int_to_ptr.vmem [resolvable:$true] %s662
      %665 = dma.vmem_to_hbm [thread:$0]  %s663, 128, %s8, [#allocation15]
    $region53: #{tpu_custom_call.1} parent=1 // pred_fallthru
      _
    // Predicated region
    $region54: #{tpu_custom_call.1} parent=1 // pred_check
      _
    $region55: #{tpu_custom_call.1} parent=1 // pred_check_branch
      %667 = sbr.rel (0) target = $region57
    $region56: #{tpu_custom_call.1} parent=1 // pred_region
      %668 = dma.done [#allocation6], 128
    $region57: #{tpu_custom_call.1} parent=1 // pred_fallthru
      _
    // Predicated region
    $region58: #{tpu_custom_call.1} parent=1 // pred_check
      _
    $region59: #{tpu_custom_call.1} parent=1 // pred_check_branch
      %670 = sbr.rel (0) target = $region61
    $region60: #{tpu_custom_call.1} parent=1 // pred_region
      %671 = dma.done [#allocation15], 128
    $region61: #{tpu_custom_call.1} parent=1 // pred_fallthru
      _
    %672 = vsyncpa [#allocation5], 1
    %673 = vsyncpa [#allocation8], 1
    %674 = vsyncpa [#allocation11], 1
    %675 = vsyncpa [#allocation6], 1
    %676 = vsyncpa [#allocation15], 1

</llo_original>
